<compile_context>
chip_gen: v7x
topology: tpu7x:2x2x1
jax: 0.10.0
libtpu: 0.0.40
codegen_flags: <defaults>
</compile_context>

<pallas_src>
import math

import jax
import jax.numpy as jnp
from jax.experimental import pallas as pl
from jax.experimental.pallas import tpu as pltpu

_LANE = 128
_TARGET_BLOCK_BYTES = 4 * 1024 * 1024   # ~4 MiB per block
_VMEM_LIMIT_BYTES = 32 * 1024 * 1024    # in+out double-buffered 4 MiB blocks fit easily


def _make_shift_kernel(shift):
    def kernel(x_ref, o_ref):
        o_ref[...] = x_ref[...] + jnp.asarray(shift, dtype=x_ref.dtype)
    return kernel


def _sublane_packing(dtype):
    # Minimum second-minor tiling: 8 for 4-byte, 16 for 2-byte, 32 for 1-byte.
    itemsize = jnp.dtype(dtype).itemsize
    return max(8, 32 // itemsize)


def _choose_slab_width(n):
    # Widest lane-dense slab width (multiple of 128) that divides numel.
    for w in (4096, 2048, 1024, 512, 256, 128):
        if n % w == 0:
            return w
    return None


def _shift_elementwise(x, shift, block_bytes=_TARGET_BLOCK_BYTES):
    """Single Pallas pass computing x + shift (elementwise)."""
    orig_shape = x.shape
    dtype = x.dtype
    itemsize = jnp.dtype(dtype).itemsize
    sublane = _sublane_packing(dtype)
    n = x.size

    x_flat = jnp.ravel(x)
    w = _choose_slab_width(n)
    pad = 0
    if w is None:
        # Rare fallback (numel not a multiple of 128): minimal pad so the flat
        # array reshapes to a lane-dense slab.  Costs one extra copy.
        w = _LANE
        n_pad = pl.cdiv(n, w * sublane) * (w * sublane)
        pad = n_pad - n
        x_flat = jnp.pad(x_flat, (0, pad))
    rows = x_flat.size // w
    x2d = x_flat.reshape(rows, w)

    # ~block_bytes per block, rounded to the sublane packing.  Ragged last
    # block handled by the cdiv grid (no row padding needed).
    tile_rows = max(sublane,
                    (block_bytes // (w * itemsize)) // sublane * sublane)
    if tile_rows >= rows:
        tile_rows = rows            # one full-array block
    grid = (pl.cdiv(rows, tile_rows),)

    out2d = pl.pallas_call(
        _make_shift_kernel(shift),
        out_shape=jax.ShapeDtypeStruct((rows, w), dtype),
        grid_spec=pltpu.PrefetchScalarGridSpec(
            num_scalar_prefetch=0,
            grid=grid,
            in_specs=[pl.BlockSpec((tile_rows, w), lambda i: (i, 0))],
            out_specs=pl.BlockSpec((tile_rows, w), lambda i: (i, 0)),
        ),
        compiler_params=pltpu.CompilerParams(
            dimension_semantics=("parallel",),   # megacore-shardable on v7x
            vmem_limit_bytes=_VMEM_LIMIT_BYTES,
        ),
    )(x2d)

    out = out2d.reshape(rows * w)
    if pad:
        out = out[:n]
    return out.reshape(orig_shape)


def _per_sample_numel(shape):
    m = 1
    for d in shape[1:]:
        m *= d
    return m


def preprocess_forward(x):
    """JAX/Pallas equivalent of Preprocess.forward: (x - 0.5, -log(256)*numel(x[0]))."""
    logdet = -math.log(256.0) * _per_sample_numel(x.shape)
    return _shift_elementwise(x, -0.5), logdet


def preprocess_inverse(x):
    """JAX/Pallas equivalent of Preprocess.inverse: (x + 0.5, log(256)*numel(x[0]))."""
    logdet = math.log(256.0) * _per_sample_numel(x.shape)
    return _shift_elementwise(x, 0.5), logdet


if __name__ == "__main__":
    key = jax.random.PRNGKey(0)
    k0, k1 = jax.random.split(key)

    # Primary small NCHW input consistent with an image-flow preprocess stage.
    x = jax.random.uniform(k0, (2, 4, 16, 16), dtype=jnp.float32)

    y, logdet = preprocess_forward(x)
    y = jax.block_until_ready(y)
    ref_y = x - 0.5
    ref_logdet = -math.log(256.0) * (4 * 16 * 16)
    assert y.shape == x.shape and y.dtype == x.dtype
    assert float(jnp.max(jnp.abs(y - ref_y))) < 1e-6
    assert abs(logdet - ref_logdet) < 1e-9

    # Inverse path: dedicated (x + 0.5) kernel, no extra HBM passes.
    yi, logdet_i = preprocess_inverse(x)
    yi = jax.block_until_ready(yi)
    assert float(jnp.max(jnp.abs(yi - (x + 0.5)))) < 1e-6
    assert abs(logdet_i + ref_logdet) < 1e-9

    # Exercise the multi-block + ragged-last-block path with a tiny block size
    # (numel = 3200 -> slab (25, 128), tile_rows = 8, grid = 4, last block ragged).
    x2 = jax.random.uniform(k1, (2, 4, 20, 20), dtype=jnp.float32)
    y2 = jax.block_until_ready(_shift_elementwise(x2, -0.5, block_bytes=4096))
    assert float(jnp.max(jnp.abs(y2 - (x2 - 0.5)))) < 1e-6

    print("KERNEL_OK")
</pallas_src>

<mosaic_0001>
module attributes {stable_mosaic.version = 11 : i64} {
  func.func @kernel(%arg0: i32, %arg1: memref<1x2048xf32, #tpu.memory_space<vmem>>, %arg2: memref<1x2048xf32, #tpu.memory_space<vmem>>) attributes {dimension_semantics = [#tpu.dimension_semantics<parallel>], iteration_bounds = array<i64: 1>, scalar_prefetch = 0 : i64, scratch_operands = 0 : i64, tpu.core_type = #tpu.core_type<tc>, window_params = [{transform_indices = @transform_0, window_bounds = array<i64: 1, 2048>}, {transform_indices = @transform_1, window_bounds = array<i64: 1, 2048>}]} {
    %c0 = arith.constant 0 : index
    %c0_0 = arith.constant 0 : index
    %0 = vector.load %arg1[%c0, %c0_0] : memref<1x2048xf32, #tpu.memory_space<vmem>>, vector<1x2048xf32>
    %cst = arith.constant -5.000000e-01 : f32
    %1 = vector.broadcast %cst : f32 to vector<1x2048xf32>
    %2 = arith.addf %0, %1 : vector<1x2048xf32>
    %c0_1 = arith.constant 0 : index
    %c0_2 = arith.constant 0 : index
    %3 = vector.load %arg2[%c0_1, %c0_2] : memref<1x2048xf32, #tpu.memory_space<vmem>>, vector<1x2048xf32>
    tpu.vector_store %arg2[%c0_1, %c0_2], %2 {strides = array<i32>} : memref<1x2048xf32, #tpu.memory_space<vmem>>, vector<1x2048xf32>,
    return
  }
  func.func @transform_0(%arg0: i32) -> (i32, i32) {
    %c0_i32 = arith.constant 0 : i32
    %c0_i32_0 = arith.constant 0 : i32
    return %arg0, %c0_i32 : i32, i32
  }
  func.func @transform_1(%arg0: i32) -> (i32, i32) {
    %c0_i32 = arith.constant 0 : i32
    %c0_i32_0 = arith.constant 0 : i32
    return %arg0, %c0_i32 : i32, i32
  }
}

</mosaic_0001>

<llo_original>
// kernel: tpu_custom_call.1
$region0: #{tpu_custom_call.1}
  #allocation0 [shape = 'u32[]', space=smem, size = 0x4, offset = 0x4, fixed_abs, tag = 'smem constant byte address 0x4 - core index']
  #allocation1 [shape = 'u32[144,128]{1,0:T(1,128)}', space=vmem, size = 0x12000, scoped, tag = 'internal scratch']
  %s0 = inlined_call_operand.hbm [shape: f32[1,2048], index: 0, kind: input, shape index: {}]
  %s1 = inlined_call_operand.hbm [shape: f32[1,2048], index: 1, kind: output, shape index: {}]
  %s2 = sld [smem:[#allocation0]]
  $region18: #{tpu_custom_call.1} parent=0
    _
  %s4 = ssub.s32 1, %s2
  %s5 = scalar_select 0, %s4, %s2
  $region1: #{tpu_custom_call.1} parent=0
    #allocation2 [shape = 'u8[8192]{0}', space=vmem, size = 0x2000, scoped, tag = 'input window, operand 0, single buffered']
    #allocation3 [shape = 's32[1]{0}', space=sflag, size = 0x4, scoped, tag = 'scoped memory for tpu_custom_call.1']
    #allocation4 [shape = 's32[1]{0}', space=sflag, size = 0x4, scoped, tag = 'scoped memory for tpu_custom_call.1']
    #allocation5 [shape = 'u8[8192]{0}', space=vmem, size = 0x2000, scoped, tag = 'output window, operand 0, single buffered']
    %6 = vsyncpa [#allocation3], 0
    %7 = vsyncpa [#allocation4], 0
    // Predicated region
    $region2: #{tpu_custom_call.1} parent=1 // pred_check
      _
    $region3: #{tpu_custom_call.1} parent=1 // pred_check_branch
      %9 = sbr.rel (0) target = $region5
    $region4: #{tpu_custom_call.1} parent=1 // pred_region
      %s11 = ssub.s32 256, 256
      %12 = vsyncadd [#allocation3], %s11
      %s14 = sshll.u32 [#allocation2], 4
      %s15 = int_to_ptr.vmem [resolvable:$true] %s14
      %17 = dma.hbm_to_vmem [thread:$0]  %s0, 256, %s15, [#allocation3]
    $region5: #{tpu_custom_call.1} parent=1 // pred_fallthru
      _
    // Predicated region
    $region6: #{tpu_custom_call.1} parent=1 // pred_check
      _
    $region7: #{tpu_custom_call.1} parent=1 // pred_check_branch
      %19 = sbr.rel (0) target = $region9
    $region8: #{tpu_custom_call.1} parent=1 // pred_region
      %20 = dma.done [#allocation3], 256
    $region9: #{tpu_custom_call.1} parent=1 // pred_fallthru
      _
    %v21 = vld [vmem:[#allocation2] sm:$0xff]
    %v22 = vld [vmem:[#allocation2 + $0x8] sm:$0xff]
    %v23 = vadd.f32 %v21, -0.5
    %v24 = vadd.f32 %v22, -0.5
    %25 = vst [vmem:[#allocation5] sm:$0xff] %v23
    %26 = vst [vmem:[#allocation5 + $0x8] sm:$0xff] %v24
    // Predicated region
    $region10: #{tpu_custom_call.1} parent=1 // pred_check
      _
    $region11: #{tpu_custom_call.1} parent=1 // pred_check_branch
      %28 = sbr.rel (0) target = $region13
    $region12: #{tpu_custom_call.1} parent=1 // pred_region
      %s30 = ssub.s32 256, 256
      %31 = vsyncadd [#allocation4], %s30
      %s33 = sshll.u32 [#allocation5], 4
      %s34 = int_to_ptr.vmem [resolvable:$true] %s33
      %36 = dma.vmem_to_hbm [thread:$0]  %s34, 256, %s1, [#allocation4]
    $region13: #{tpu_custom_call.1} parent=1 // pred_fallthru
      _
    // Predicated region
    $region14: #{tpu_custom_call.1} parent=1 // pred_check
      _
    $region15: #{tpu_custom_call.1} parent=1 // pred_check_branch
      %38 = sbr.rel (0) target = $region17
    $region16: #{tpu_custom_call.1} parent=1 // pred_region
      %39 = dma.done [#allocation4], 256
    $region17: #{tpu_custom_call.1} parent=1 // pred_fallthru
      _
    %40 = vsyncpa [#allocation3], 1
    %41 = vsyncpa [#allocation4], 1

</llo_original>
